<compile_context>
chip_gen: v5e
topology: v5e:2x2
jax: 0.10.0
libtpu: 0.0.40
codegen_flags: <defaults>
</compile_context>

<pallas_src>
import jax
import jax.numpy as jnp
from jax.experimental import pallas as pl
from jax.experimental.pallas import tpu as pltpu


def mlp_kernel(x_ref,
               w1_ref, b1_ref,
               w2_ref, b2_ref,
               w3_ref, b3_ref,
               w45_ref, b45_ref,
               o_ref):
    # x tile: (TB, in_dim); weights in PyTorch (out, in) layout.
    # Everything downstream is computed as (features, TB) so activations and
    # the output block are lane-dense.
    x = x_ref[...]                                              # (TB, in_dim)

    # h1 = W1 @ x^T  -- rhs-transposed matmul fused into the MXU op.
    h = jax.lax.dot_general(
        w1_ref[...], x,
        dimension_numbers=(((1,), (1,)), ((), ())),
        preferred_element_type=jnp.float32) + b1_ref[...]       # (64, TB)
    h = jnp.maximum(h, 0.0)

    h = jnp.dot(w2_ref[...], h,
                preferred_element_type=jnp.float32) + b2_ref[...]   # (32, TB)
    h = jnp.maximum(h, 0.0)

    h = jnp.dot(w3_ref[...], h,
                preferred_element_type=jnp.float32) + b3_ref[...]   # (32, TB)
    h = jnp.maximum(h, 0.0)

    # Fused linear4+linear5 (no activation between them in the PyTorch forward).
    o_ref[...] = (jnp.dot(w45_ref[...], h,
                          preferred_element_type=jnp.float32)
                  + b45_ref[...])                                    # (1, TB)


def mlp_forward(x, params, *, tb=256):
    """x: (B, in_dim) float32. params: list of (W, b) in PyTorch layout
    (W: (out, in), b: (out,)). Returns (B, 1) float32."""
    (w1, b1), (w2, b2), (w3, b3), (w4, b4), (w5, b5) = params
    B, in_dim = x.shape

    hp = jax.lax.Precision.HIGHEST
    # Fuse linear4/linear5: y = W5(W4 h + b4) + b5 = (W5 W4) h + (W5 b4 + b5)
    w45 = jnp.dot(w5, w4, precision=hp)                           # (1, 32)
    b45 = jnp.dot(w5, b4[:, None], precision=hp) + b5[:, None]    # (1, 1)

    # Biases as columns -> broadcast across the lane (batch) axis in-kernel.
    b1c, b2c, b3c = b1[:, None], b2[:, None], b3[:, None]

    # Tile size: keep lane-dense (multiple of 128) but don't over-pad tiny B.
    tb = min(tb, ((B + 127) // 128) * 128)
    n_tiles = pl.cdiv(B, tb)
    b_pad = n_tiles * tb
    if b_pad != B:
        x = jnp.pad(x, ((0, b_pad - B), (0, 0)))

    weights = [w1, b1c, w2, b2c, w3, b3c, w45, b45]
    weight_specs = [pl.BlockSpec(w.shape, lambda i: (0, 0)) for w in weights]

    flops = 2 * b_pad * (in_dim * 64 + 64 * 32 + 32 * 32 + 32 * 1)
    bytes_accessed = 4 * (b_pad * in_dim + b_pad
                          + sum(int(w.size) for w in weights))

    out_t = pl.pallas_call(
        mlp_kernel,
        out_shape=jax.ShapeDtypeStruct((1, b_pad), jnp.float32),
        grid=(n_tiles,),
        in_specs=[pl.BlockSpec((tb, in_dim), lambda i: (i, 0))] + weight_specs,
        out_specs=pl.BlockSpec((1, tb), lambda i: (0, i)),
        compiler_params=pltpu.CompilerParams(
            dimension_semantics=("parallel",)),
        cost_estimate=pl.CostEstimate(
            flops=flops, transcendentals=0, bytes_accessed=bytes_accessed),
    )(x, *weights)

    # (1, b_pad) lane-dense slab -> (B, 1)
    return out_t[0, :B][:, None]


def init_params(key, input_dim, output_dim):
    """Deterministic PyTorch-style init: W ~ U(+/-1/sqrt(fan_in)), (out, in)."""
    dims = [input_dim, 64, 32, 32, 16, output_dim]
    params = []
    for i in range(len(dims) - 1):
        fan_in, fan_out = dims[i], dims[i + 1]
        key, kw, kb = jax.random.split(key, 3)
        bound = 1.0 / jnp.sqrt(jnp.float32(fan_in))
        w = jax.random.uniform(kw, (fan_out, fan_in), jnp.float32, -bound, bound)
        b = jax.random.uniform(kb, (fan_out,), jnp.float32, -bound, bound)
        params.append((w, b))
    return params


def reference_forward(x, params):
    hp = jax.lax.Precision.HIGHEST
    h = x
    for i, (w, b) in enumerate(params):
        h = jnp.dot(h, w.T, precision=hp) + b
        if i < 3:  # ReLU only after the first three linears
            h = jnp.maximum(h, 0.0)
    return h


if __name__ == "__main__":
    key = jax.random.PRNGKey(0)

    input_dim = 8    # bike-sharing features after dropping casual/registered/count
    output_dim = 1
    batch = 16

    key, kx = jax.random.split(key)
    x = jax.random.normal(kx, (batch, input_dim), jnp.float32)

    params = init_params(key, input_dim, output_dim)

    out = mlp_forward(x, params)
    out = jax.block_until_ready(out)

    ref = reference_forward(x, params)
    assert out.shape == (batch, output_dim), out.shape
    err = float(jnp.max(jnp.abs(out - ref)))
    assert jnp.allclose(out, ref, atol=1e-4, rtol=1e-4), err

    # TODO(synk): Dropout(0.2) and Sigmoid are defined on the module but never
    # used in forward(), so they are intentionally not implemented.
    print("KERNEL_OK")
</pallas_src>

<mosaic_0001>
module attributes {stable_mosaic.version = 11 : i64} {
  func.func @mlp_kernel(%arg0: i32, %arg1: memref<128x8xf32, #tpu.memory_space<vmem>>, %arg2: memref<64x8xf32, #tpu.memory_space<vmem>>, %arg3: memref<64x1xf32, #tpu.memory_space<vmem>>, %arg4: memref<32x64xf32, #tpu.memory_space<vmem>>, %arg5: memref<32x1xf32, #tpu.memory_space<vmem>>, %arg6: memref<32x32xf32, #tpu.memory_space<vmem>>, %arg7: memref<32x1xf32, #tpu.memory_space<vmem>>, %arg8: memref<1x32xf32, #tpu.memory_space<vmem>>, %arg9: memref<1x1xf32, #tpu.memory_space<vmem>>, %arg10: memref<1x128xf32, #tpu.memory_space<vmem>>) attributes {dimension_semantics = [#tpu.dimension_semantics<parallel>], iteration_bounds = array<i64: 1>, scalar_prefetch = 0 : i64, scratch_operands = 0 : i64, tpu.core_type = #tpu.core_type<tc>, window_params = [{transform_indices = @transform_0, window_bounds = array<i64: 128, 8>}, {pipeline_mode = #tpu.pipeline_mode<synchronous>, transform_indices = @transform_1, window_bounds = array<i64: 64, 8>}, {pipeline_mode = #tpu.pipeline_mode<synchronous>, transform_indices = @transform_2, window_bounds = array<i64: 64, 1>}, {pipeline_mode = #tpu.pipeline_mode<synchronous>, transform_indices = @transform_3, window_bounds = array<i64: 32, 64>}, {pipeline_mode = #tpu.pipeline_mode<synchronous>, transform_indices = @transform_4, window_bounds = array<i64: 32, 1>}, {pipeline_mode = #tpu.pipeline_mode<synchronous>, transform_indices = @transform_5, window_bounds = array<i64: 32, 32>}, {pipeline_mode = #tpu.pipeline_mode<synchronous>, transform_indices = @transform_6, window_bounds = array<i64: 32, 1>}, {pipeline_mode = #tpu.pipeline_mode<synchronous>, transform_indices = @transform_7, window_bounds = array<i64: 1, 32>}, {pipeline_mode = #tpu.pipeline_mode<synchronous>, transform_indices = @transform_8, window_bounds = array<i64: 1, 1>}, {transform_indices = @transform_9, window_bounds = array<i64: 1, 128>}]} {
    %c0 = arith.constant 0 : index
    %c0_0 = arith.constant 0 : index
    %0 = vector.load %arg1[%c0, %c0_0] : memref<128x8xf32, #tpu.memory_space<vmem>>, vector<128x8xf32>
    %c0_1 = arith.constant 0 : index
    %c0_2 = arith.constant 0 : index
    %1 = vector.load %arg2[%c0_1, %c0_2] : memref<64x8xf32, #tpu.memory_space<vmem>>, vector<64x8xf32>
    %cst = arith.constant dense<0.000000e+00> : vector<64x128xf32>
    %2 = tpu.matmul %1, %0, %cst {dimension_numbers = #tpu.dot_dimension_numbers<[1], [1], [0], [0], [0, 0, 1, 0], [], []>} : vector<64x8xf32>, vector<128x8xf32>, vector<64x128xf32> -> vector<64x128xf32>
    %c0_3 = arith.constant 0 : index
    %c0_4 = arith.constant 0 : index
    %3 = vector.load %arg3[%c0_3, %c0_4] : memref<64x1xf32, #tpu.memory_space<vmem>>, vector<64x1xf32>
    %4 = vector.broadcast %3 : vector<64x1xf32> to vector<64x128xf32>
    %5 = arith.addf %2, %4 : vector<64x128xf32>
    %cst_5 = arith.constant 0.000000e+00 : f32
    %6 = vector.broadcast %cst_5 : f32 to vector<64x128xf32>
    %7 = arith.maximumf %5, %6 : vector<64x128xf32>
    %c0_6 = arith.constant 0 : index
    %c0_7 = arith.constant 0 : index
    %8 = vector.load %arg4[%c0_6, %c0_7] : memref<32x64xf32, #tpu.memory_space<vmem>>, vector<32x64xf32>
    %cst_8 = arith.constant dense<0.000000e+00> : vector<32x128xf32>
    %9 = tpu.matmul %8, %7, %cst_8 {dimension_numbers = #tpu.dot_dimension_numbers<[1], [0], [0], [1], [0, 0, 1, 1], [], []>} : vector<32x64xf32>, vector<64x128xf32>, vector<32x128xf32> -> vector<32x128xf32>
    %c0_9 = arith.constant 0 : index
    %c0_10 = arith.constant 0 : index
    %10 = vector.load %arg5[%c0_9, %c0_10] : memref<32x1xf32, #tpu.memory_space<vmem>>, vector<32x1xf32>
    %11 = vector.broadcast %10 : vector<32x1xf32> to vector<32x128xf32>
    %12 = arith.addf %9, %11 : vector<32x128xf32>
    %cst_11 = arith.constant 0.000000e+00 : f32
    %13 = vector.broadcast %cst_11 : f32 to vector<32x128xf32>
    %14 = arith.maximumf %12, %13 : vector<32x128xf32>
    %c0_12 = arith.constant 0 : index
    %c0_13 = arith.constant 0 : index
    %15 = vector.load %arg6[%c0_12, %c0_13] : memref<32x32xf32, #tpu.memory_space<vmem>>, vector<32x32xf32>
    %cst_14 = arith.constant dense<0.000000e+00> : vector<32x128xf32>
    %16 = tpu.matmul %15, %14, %cst_14 {dimension_numbers = #tpu.dot_dimension_numbers<[1], [0], [0], [1], [0, 0, 1, 1], [], []>} : vector<32x32xf32>, vector<32x128xf32>, vector<32x128xf32> -> vector<32x128xf32>
    %c0_15 = arith.constant 0 : index
    %c0_16 = arith.constant 0 : index
    %17 = vector.load %arg7[%c0_15, %c0_16] : memref<32x1xf32, #tpu.memory_space<vmem>>, vector<32x1xf32>
    %18 = vector.broadcast %17 : vector<32x1xf32> to vector<32x128xf32>
    %19 = arith.addf %16, %18 : vector<32x128xf32>
    %cst_17 = arith.constant 0.000000e+00 : f32
    %20 = vector.broadcast %cst_17 : f32 to vector<32x128xf32>
    %21 = arith.maximumf %19, %20 : vector<32x128xf32>
    %c0_18 = arith.constant 0 : index
    %c0_19 = arith.constant 0 : index
    %22 = vector.load %arg8[%c0_18, %c0_19] : memref<1x32xf32, #tpu.memory_space<vmem>>, vector<1x32xf32>
    %cst_20 = arith.constant dense<0.000000e+00> : vector<1x128xf32>
    %23 = tpu.matmul %22, %21, %cst_20 {dimension_numbers = #tpu.dot_dimension_numbers<[1], [0], [0], [1], [0, 0, 1, 1], [], []>} : vector<1x32xf32>, vector<32x128xf32>, vector<1x128xf32> -> vector<1x128xf32>
    %c0_21 = arith.constant 0 : index
    %c0_22 = arith.constant 0 : index
    %24 = vector.load %arg9[%c0_21, %c0_22] : memref<1x1xf32, #tpu.memory_space<vmem>>, vector<1x1xf32>
    %25 = vector.broadcast %24 : vector<1x1xf32> to vector<1x128xf32>
    %26 = arith.addf %23, %25 : vector<1x128xf32>
    %c0_23 = arith.constant 0 : index
    %c0_24 = arith.constant 0 : index
    %27 = vector.load %arg10[%c0_23, %c0_24] : memref<1x128xf32, #tpu.memory_space<vmem>>, vector<1x128xf32>
    tpu.vector_store %arg10[%c0_23, %c0_24], %26 {strides = array<i32>} : memref<1x128xf32, #tpu.memory_space<vmem>>, vector<1x128xf32>,
    return
  }
  func.func @transform_0(%arg0: i32) -> (i32, i32) {
    %c0_i32 = arith.constant 0 : i32
    %c0_i32_0 = arith.constant 0 : i32
    return %arg0, %c0_i32 : i32, i32
  }
  func.func @transform_1(%arg0: i32) -> (i32, i32) {
    %c0_i32 = arith.constant 0 : i32
    %c0_i32_0 = arith.constant 0 : i32
    %c0_i32_1 = arith.constant 0 : i32
    return %c0_i32, %c0_i32_0 : i32, i32
  }
  func.func @transform_2(%arg0: i32) -> (i32, i32) {
    %c0_i32 = arith.constant 0 : i32
    %c0_i32_0 = arith.constant 0 : i32
    %c0_i32_1 = arith.constant 0 : i32
    return %c0_i32, %c0_i32_0 : i32, i32
  }
  func.func @transform_3(%arg0: i32) -> (i32, i32) {
    %c0_i32 = arith.constant 0 : i32
    %c0_i32_0 = arith.constant 0 : i32
    %c0_i32_1 = arith.constant 0 : i32
    return %c0_i32, %c0_i32_0 : i32, i32
  }
  func.func @transform_4(%arg0: i32) -> (i32, i32) {
    %c0_i32 = arith.constant 0 : i32
    %c0_i32_0 = arith.constant 0 : i32
    %c0_i32_1 = arith.constant 0 : i32
    return %c0_i32, %c0_i32_0 : i32, i32
  }
  func.func @transform_5(%arg0: i32) -> (i32, i32) {
    %c0_i32 = arith.constant 0 : i32
    %c0_i32_0 = arith.constant 0 : i32
    %c0_i32_1 = arith.constant 0 : i32
    return %c0_i32, %c0_i32_0 : i32, i32
  }
  func.func @transform_6(%arg0: i32) -> (i32, i32) {
    %c0_i32 = arith.constant 0 : i32
    %c0_i32_0 = arith.constant 0 : i32
    %c0_i32_1 = arith.constant 0 : i32
    return %c0_i32, %c0_i32_0 : i32, i32
  }
  func.func @transform_7(%arg0: i32) -> (i32, i32) {
    %c0_i32 = arith.constant 0 : i32
    %c0_i32_0 = arith.constant 0 : i32
    %c0_i32_1 = arith.constant 0 : i32
    return %c0_i32, %c0_i32_0 : i32, i32
  }
  func.func @transform_8(%arg0: i32) -> (i32, i32) {
    %c0_i32 = arith.constant 0 : i32
    %c0_i32_0 = arith.constant 0 : i32
    %c0_i32_1 = arith.constant 0 : i32
    return %c0_i32, %c0_i32_0 : i32, i32
  }
  func.func @transform_9(%arg0: i32) -> (i32, i32) {
    %c0_i32 = arith.constant 0 : i32
    %c0_i32_0 = arith.constant 0 : i32
    return %c0_i32, %arg0 : i32, i32
  }
}

</mosaic_0001>

<llo_original>
// kernel: tpu_custom_call.1
$region0: #{tpu_custom_call.1}
  #allocation0 [shape = 'u32[]', space=smem, size = 0x4, offset = 0x4, fixed_abs, tag = 'smem constant byte address 0x4 - core index']
  #allocation1 [shape = 'u32[72,128]{1,0:T(1,128)}', space=vmem, size = 0x9000, scoped, tag = 'internal scratch']
  #allocation2 [shape = 'f32[1,1]{1,0:T(1,128)S(1)}', space=vmem, size = 0x200, scoped, tag = 'scoped memory for tpu_custom_call.1']
  %s0 = inlined_call_operand.vmem [shape: f32[128,8], index: 0, kind: input, shape index: {}]
  %s1 = inlined_call_operand.vmem [shape: f32[64,8], index: 1, kind: input, shape index: {}]
  %s2 = inlined_call_operand.vmem [shape: f32[64,1], index: 2, kind: input, shape index: {}]
  %s3 = inlined_call_operand.vmem [shape: f32[32,64], index: 3, kind: input, shape index: {}]
  %s4 = inlined_call_operand.vmem [shape: f32[32,1], index: 4, kind: input, shape index: {}]
  %s5 = inlined_call_operand.vmem [shape: f32[32,32], index: 5, kind: input, shape index: {}]
  %s6 = inlined_call_operand.vmem [shape: f32[32,1], index: 6, kind: input, shape index: {}]
  %s7 = inlined_call_operand.vmem [shape: f32[1,32], index: 7, kind: input, shape index: {}]
  %s8 = inlined_call_operand.<no memory space> [shape: f32[1,1], index: 8, kind: input, shape index: {}]
  %s9 = inlined_call_operand.hbm [shape: f32[1,128], index: 9, kind: output, shape index: {}]
  %s10 = sld [smem:[#allocation0]]
  $region46: #{tpu_custom_call.1} parent=0
    _
  %s12 = ssub.s32 1, %s10
  %s13 = scalar_select 0, %s12, %s10
  %v14 = vstv %s8
  %15 = vst [vmem:[#allocation2] sm:$0x1] %v14
  $region1: #{tpu_custom_call.1} parent=0
    #allocation3 [shape = 'u8[512]{0}', space=vmem, size = 0x400, scoped, tag = 'output window, operand 0, single buffered']
    #allocation4 [shape = 's32[1]{0}', space=sflag, size = 0x4, scoped, tag = 'scoped memory for tpu_custom_call.1']
    %16 = vsyncpa [#allocation4], 0
    // Predicated region
    $region2: #{tpu_custom_call.1} parent=1 // pred_check
      _
    $region3: #{tpu_custom_call.1} parent=1 // pred_check_branch
      %18 = sbr.rel (0) target = $region5
    $region4: #{tpu_custom_call.1} parent=1 // pred_region
      _
    $region5: #{tpu_custom_call.1} parent=1 // pred_fallthru
      _
    // Predicated region
    $region6: #{tpu_custom_call.1} parent=1 // pred_check
      _
    $region7: #{tpu_custom_call.1} parent=1 // pred_check_branch
      %20 = sbr.rel (0) target = $region9
    $region8: #{tpu_custom_call.1} parent=1 // pred_region
      _
    $region9: #{tpu_custom_call.1} parent=1 // pred_fallthru
      _
    // Predicated region
    $region10: #{tpu_custom_call.1} parent=1 // pred_check
      _
    $region11: #{tpu_custom_call.1} parent=1 // pred_check_branch
      %22 = sbr.rel (0) target = $region13
    $region12: #{tpu_custom_call.1} parent=1 // pred_region
      _
    $region13: #{tpu_custom_call.1} parent=1 // pred_fallthru
      _
    // Predicated region
    $region14: #{tpu_custom_call.1} parent=1 // pred_check
      _
    $region15: #{tpu_custom_call.1} parent=1 // pred_check_branch
      %24 = sbr.rel (0) target = $region17
    $region16: #{tpu_custom_call.1} parent=1 // pred_region
      _
    $region17: #{tpu_custom_call.1} parent=1 // pred_fallthru
      _
    // Predicated region
    $region18: #{tpu_custom_call.1} parent=1 // pred_check
      _
    $region19: #{tpu_custom_call.1} parent=1 // pred_check_branch
      %26 = sbr.rel (0) target = $region21
    $region20: #{tpu_custom_call.1} parent=1 // pred_region
      _
    $region21: #{tpu_custom_call.1} parent=1 // pred_fallthru
      _
    // Predicated region
    $region22: #{tpu_custom_call.1} parent=1 // pred_check
      _
    $region23: #{tpu_custom_call.1} parent=1 // pred_check_branch
      %28 = sbr.rel (0) target = $region25
    $region24: #{tpu_custom_call.1} parent=1 // pred_region
      _
    $region25: #{tpu_custom_call.1} parent=1 // pred_fallthru
      _
    // Predicated region
    $region26: #{tpu_custom_call.1} parent=1 // pred_check
      _
    $region27: #{tpu_custom_call.1} parent=1 // pred_check_branch
      %30 = sbr.rel (0) target = $region29
    $region28: #{tpu_custom_call.1} parent=1 // pred_region
      _
    $region29: #{tpu_custom_call.1} parent=1 // pred_fallthru
      _
    // Predicated region
    $region30: #{tpu_custom_call.1} parent=1 // pred_check
      _
    $region31: #{tpu_custom_call.1} parent=1 // pred_check_branch
      %32 = sbr.rel (0) target = $region33
    $region32: #{tpu_custom_call.1} parent=1 // pred_region
      _
    $region33: #{tpu_custom_call.1} parent=1 // pred_fallthru
      _
    // Predicated region
    $region34: #{tpu_custom_call.1} parent=1 // pred_check
      _
    $region35: #{tpu_custom_call.1} parent=1 // pred_check_branch
      %34 = sbr.rel (0) target = $region37
    $region36: #{tpu_custom_call.1} parent=1 // pred_region
      _
    $region37: #{tpu_custom_call.1} parent=1 // pred_fallthru
      _
    %v35 = vld [vmem:[%s0] sm:$0xff]
    %v36 = vld [vmem:[%s0 + $0x8] sm:$0xff]
    %v37 = vld [vmem:[%s0 + $0x10] sm:$0xff]
    %v38 = vld [vmem:[%s0 + $0x18] sm:$0xff]
    %v39 = vld [vmem:[%s0 + $0x20] sm:$0xff]
    %v40 = vld [vmem:[%s0 + $0x28] sm:$0xff]
    %v41 = vld [vmem:[%s0 + $0x30] sm:$0xff]
    %v42 = vld [vmem:[%s0 + $0x38] sm:$0xff]
    %v43 = vld [vmem:[%s0 + $0x40] sm:$0xff]
    %v44 = vld [vmem:[%s0 + $0x48] sm:$0xff]
    %v45 = vld [vmem:[%s0 + $0x50] sm:$0xff]
    %v46 = vld [vmem:[%s0 + $0x58] sm:$0xff]
    %v47 = vld [vmem:[%s0 + $0x60] sm:$0xff]
    %v48 = vld [vmem:[%s0 + $0x68] sm:$0xff]
    %v49 = vld [vmem:[%s0 + $0x70] sm:$0xff]
    %v50 = vld [vmem:[%s0 + $0x78] sm:$0xff]
    %v51 = vld [vmem:[%s1] sm:$0xff]
    %v52 = vld [vmem:[%s1 + $0x8] sm:$0xff]
    %v53 = vld [vmem:[%s1 + $0x10] sm:$0xff]
    %v54 = vld [vmem:[%s1 + $0x18] sm:$0xff]
    %v55 = vld [vmem:[%s1 + $0x20] sm:$0xff]
    %v56 = vld [vmem:[%s1 + $0x28] sm:$0xff]
    %v57 = vld [vmem:[%s1 + $0x30] sm:$0xff]
    %v58 = vld [vmem:[%s1 + $0x38] sm:$0xff]
    %v59 = vld [vmem:[%s2] sm:$0xff]
    %v60 = vld [vmem:[%s2 + $0x8] sm:$0xff]
    %v61 = vld [vmem:[%s2 + $0x10] sm:$0xff]
    %v62 = vld [vmem:[%s2 + $0x18] sm:$0xff]
    %v63 = vld [vmem:[%s2 + $0x20] sm:$0xff]
    %v64 = vld [vmem:[%s2 + $0x28] sm:$0xff]
    %v65 = vld [vmem:[%s2 + $0x30] sm:$0xff]
    %v66 = vld [vmem:[%s2 + $0x38] sm:$0xff]
    %68 = vset.pattern.permute.xlu0 0
    %69 = vperm.xlu0 %68, %v59
    %v70 = vpop.permute.xlu0 %69
    %73 = vset.pattern.permute.xlu0 0
    %74 = vperm.xlu0 %73, %v60
    %v75 = vpop.permute.xlu0 %74
    %78 = vset.pattern.permute.xlu0 0
    %79 = vperm.xlu0 %78, %v61
    %v80 = vpop.permute.xlu0 %79
    %83 = vset.pattern.permute.xlu0 0
    %84 = vperm.xlu0 %83, %v62
    %v85 = vpop.permute.xlu0 %84
    %88 = vset.pattern.permute.xlu0 0
    %89 = vperm.xlu0 %88, %v63
    %v90 = vpop.permute.xlu0 %89
    %93 = vset.pattern.permute.xlu0 0
    %94 = vperm.xlu0 %93, %v64
    %v95 = vpop.permute.xlu0 %94
    %98 = vset.pattern.permute.xlu0 0
    %99 = vperm.xlu0 %98, %v65
    %v100 = vpop.permute.xlu0 %99
    %103 = vset.pattern.permute.xlu0 0
    %104 = vperm.xlu0 %103, %v66
    %v105 = vpop.permute.xlu0 %104
    %vm107 = vcmask 64512
    %v109 = vsel %vm107, %v51, 0
    %v112 = vsel %vm107, %v52, 0
    %v115 = vsel %vm107, %v53, 0
    %v118 = vsel %vm107, %v54, 0
    %v121 = vsel %vm107, %v55, 0
    %v124 = vsel %vm107, %v56, 0
    %v127 = vsel %vm107, %v57, 0
    %v130 = vsel %vm107, %v58, 0
    %v133 = vsel %vm107, %v35, 0
    %v136 = vsel %vm107, %v36, 0
    %v139 = vsel %vm107, %v37, 0
    %v142 = vsel %vm107, %v38, 0
    %v145 = vsel %vm107, %v39, 0
    %v148 = vsel %vm107, %v40, 0
    %v151 = vsel %vm107, %v41, 0
    %v154 = vsel %vm107, %v42, 0
    %v157 = vsel %vm107, %v43, 0
    %v160 = vsel %vm107, %v44, 0
    %v163 = vsel %vm107, %v45, 0
    %v166 = vsel %vm107, %v46, 0
    %v169 = vsel %vm107, %v47, 0
    %v172 = vsel %vm107, %v48, 0
    %v175 = vsel %vm107, %v49, 0
    %v178 = vsel %vm107, %v50, 0
    %180 = vmatpush.xpose.msra.mxu0 %v178
    %181 = vmatpush.xpose.msra.mxu0 %v175
    %182 = vmatpush.xpose.msra.mxu0 %v172
    %183 = vmatpush.xpose.msra.mxu0 %v169
    %184 = vmatpush.xpose.msra.mxu0 %v166
    %185 = vmatpush.xpose.msra.mxu0 %v163
    %186 = vmatpush.xpose.msra.mxu0 %v160
    %187 = vmatpush.xpose.msra.mxu0 %v157
    %188 = vmatpush.xpose.msra.mxu0 %v154
    %189 = vmatpush.xpose.msra.mxu0 %v151
    %190 = vmatpush.xpose.msra.mxu0 %v148
    %191 = vmatpush.xpose.msra.mxu0 %v145
    %192 = vmatpush.xpose.msra.mxu0 %v142
    %193 = vmatpush.xpose.msra.mxu0 %v139
    %194 = vmatpush.xpose.msra.mxu0 %v136
    %195 = vmatpush.xpose.msra.mxu0 %v133
    %196 = vmatmul.f32.gmra.mxu0 %v109
    %v197 = vpop.f32.mrf.mxu0
    %v198 = vadd.f32 %v70, %v197
    %199 = vmatmul.f32.gmra.mxu0 %v112
    %v200 = vpop.f32.mrf.mxu0
    %v201 = vadd.f32 %v75, %v200
    %202 = vmatmul.f32.gmra.mxu0 %v115
    %v203 = vpop.f32.mrf.mxu0
    %v204 = vadd.f32 %v80, %v203
    %205 = vmatmul.f32.gmra.mxu0 %v118
    %v206 = vpop.f32.mrf.mxu0
    %v207 = vadd.f32 %v85, %v206
    %208 = vmatmul.f32.gmra.mxu0 %v121
    %v209 = vpop.f32.mrf.mxu0
    %v210 = vadd.f32 %v90, %v209
    %211 = vmatmul.f32.gmra.mxu0 %v124
    %v212 = vpop.f32.mrf.mxu0
    %v213 = vadd.f32 %v95, %v212
    %214 = vmatmul.f32.gmra.mxu0 %v127
    %v215 = vpop.f32.mrf.mxu0
    %v216 = vadd.f32 %v100, %v215
    %217 = vmatmul.f32.gmra.mxu0 %v130
    %v218 = vpop.f32.mrf.mxu0
    %v219 = vadd.f32 %v105, %v218
    %220 = vdwg.mxu0
    %v221 = vmax.f32 %v198, 0.0
    %v222 = vmax.f32 %v201, 0.0
    %v223 = vmax.f32 %v204, 0.0
    %v224 = vmax.f32 %v207, 0.0
    %v225 = vmax.f32 %v210, 0.0
    %v226 = vmax.f32 %v213, 0.0
    %v227 = vmax.f32 %v216, 0.0
    %v228 = vmax.f32 %v219, 0.0
    %v229 = vld [vmem:[%s3] sm:$0xff]
    %v230 = vld [vmem:[%s3 + $0x8] sm:$0xff]
    %v231 = vld [vmem:[%s3 + $0x10] sm:$0xff]
    %v232 = vld [vmem:[%s3 + $0x18] sm:$0xff]
    %v233 = vld [vmem:[%s4] sm:$0xff]
    %v234 = vld [vmem:[%s4 + $0x8] sm:$0xff]
    %v235 = vld [vmem:[%s4 + $0x10] sm:$0xff]
    %v236 = vld [vmem:[%s4 + $0x18] sm:$0xff]
    %238 = vset.pattern.permute.xlu0 0
    %239 = vperm.xlu0 %238, %v233
    %v240 = vpop.permute.xlu0 %239
    %243 = vset.pattern.permute.xlu0 0
    %244 = vperm.xlu0 %243, %v234
    %v245 = vpop.permute.xlu0 %244
    %248 = vset.pattern.permute.xlu0 0
    %249 = vperm.xlu0 %248, %v235
    %v250 = vpop.permute.xlu0 %249
    %253 = vset.pattern.permute.xlu0 0
    %254 = vperm.xlu0 %253, %v236
    %v255 = vpop.permute.xlu0 %254
    %vm257 = vcmask 523264
    %v259 = vsel %vm257, %v229, 0
    %v262 = vsel %vm257, %v230, 0
    %v265 = vsel %vm257, %v231, 0
    %v268 = vsel %vm257, %v232, 0
    %270 = vmatpush.msra.mxu0 0.0
    %271 = vmatpush.msra.mxu0 0.0
    %272 = vmatpush.msra.mxu0 0.0
    %273 = vmatpush.msra.mxu0 0.0
    %274 = vmatpush.msra.mxu0 0.0
    %275 = vmatpush.msra.mxu0 0.0
    %276 = vmatpush.msra.mxu0 0.0
    %277 = vmatpush.msra.mxu0 0.0
    %278 = vmatpush.msra.mxu0 %v228
    %279 = vmatpush.msra.mxu0 %v227
    %280 = vmatpush.msra.mxu0 %v226
    %281 = vmatpush.msra.mxu0 %v225
    %282 = vmatpush.msra.mxu0 %v224
    %283 = vmatpush.msra.mxu0 %v223
    %284 = vmatpush.msra.mxu0 %v222
    %285 = vmatpush.msra.mxu0 %v221
    %286 = vmatmul.f32.gmra.mxu0 %v259
    %v287 = vpop.f32.mrf.mxu0
    %v288 = vadd.f32 %v240, %v287
    %289 = vmatmul.f32.gmra.mxu0 %v262
    %v290 = vpop.f32.mrf.mxu0
    %v291 = vadd.f32 %v245, %v290
    %292 = vmatmul.f32.gmra.mxu0 %v265
    %v293 = vpop.f32.mrf.mxu0
    %v294 = vadd.f32 %v250, %v293
    %295 = vmatmul.f32.gmra.mxu0 %v268
    %v296 = vpop.f32.mrf.mxu0
    %v297 = vadd.f32 %v255, %v296
    %298 = vdwg.mxu0
    %v299 = vmax.f32 %v288, 0.0
    %v300 = vmax.f32 %v291, 0.0
    %v301 = vmax.f32 %v294, 0.0
    %v302 = vmax.f32 %v297, 0.0
    %v303 = vld [vmem:[%s5] sm:$0xff]
    %v304 = vld [vmem:[%s5 + $0x8] sm:$0xff]
    %v305 = vld [vmem:[%s5 + $0x10] sm:$0xff]
    %v306 = vld [vmem:[%s5 + $0x18] sm:$0xff]
    %v307 = vld [vmem:[%s6] sm:$0xff]
    %v308 = vld [vmem:[%s6 + $0x8] sm:$0xff]
    %v309 = vld [vmem:[%s6 + $0x10] sm:$0xff]
    %v310 = vld [vmem:[%s6 + $0x18] sm:$0xff]
    %312 = vset.pattern.permute.xlu0 0
    %313 = vperm.xlu0 %312, %v307
    %v314 = vpop.permute.xlu0 %313
    %317 = vset.pattern.permute.xlu0 0
    %318 = vperm.xlu0 %317, %v308
    %v319 = vpop.permute.xlu0 %318
    %322 = vset.pattern.permute.xlu0 0
    %323 = vperm.xlu0 %322, %v309
    %v324 = vpop.permute.xlu0 %323
    %327 = vset.pattern.permute.xlu0 0
    %328 = vperm.xlu0 %327, %v310
    %v329 = vpop.permute.xlu0 %328
    %vm331 = vcmask 261120
    %v333 = vsel %vm331, %v303, 0
    %v336 = vsel %vm331, %v304, 0
    %v339 = vsel %vm331, %v305, 0
    %v342 = vsel %vm331, %v306, 0
    %344 = vmatpush.msra.mxu0 0.0
    %345 = vmatpush.msra.mxu0 0.0
    %346 = vmatpush.msra.mxu0 0.0
    %347 = vmatpush.msra.mxu0 0.0
    %348 = vmatpush.msra.mxu0 0.0
    %349 = vmatpush.msra.mxu0 0.0
    %350 = vmatpush.msra.mxu0 0.0
    %351 = vmatpush.msra.mxu0 0.0
    %352 = vmatpush.msra.mxu0 0.0
    %353 = vmatpush.msra.mxu0 0.0
    %354 = vmatpush.msra.mxu0 0.0
    %355 = vmatpush.msra.mxu0 0.0
    %356 = vmatpush.msra.mxu0 %v302
    %357 = vmatpush.msra.mxu0 %v301
    %358 = vmatpush.msra.mxu0 %v300
    %359 = vmatpush.msra.mxu0 %v299
    %360 = vmatmul.f32.gmra.mxu0 %v333
    %v361 = vpop.f32.mrf.mxu0
    %v362 = vadd.f32 %v314, %v361
    %363 = vmatmul.f32.gmra.mxu0 %v336
    %v364 = vpop.f32.mrf.mxu0
    %v365 = vadd.f32 %v319, %v364
    %366 = vmatmul.f32.gmra.mxu0 %v339
    %v367 = vpop.f32.mrf.mxu0
    %v368 = vadd.f32 %v324, %v367
    %369 = vmatmul.f32.gmra.mxu0 %v342
    %v370 = vpop.f32.mrf.mxu0
    %v371 = vadd.f32 %v329, %v370
    %372 = vdwg.mxu0
    %v373 = vmax.f32 %v362, 0.0
    %v374 = vmax.f32 %v365, 0.0
    %v375 = vmax.f32 %v368, 0.0
    %v376 = vmax.f32 %v371, 0.0
    %v377 = vld [vmem:[%s7] sm:$0x1]
    %v378 = vld [vmem:[#allocation2] sm:$0x1]
    %380 = vset.pattern.permute.xlu0 0
    %381 = vperm.xlu0 %380, %v378
    %v382 = vpop.permute.xlu0 %381
    %v384 = vperm.slane %v382, 0
    %v386 = vsel %vm331, %v377, 0
    %388 = vmatpush.msra.mxu0 0.0
    %389 = vmatpush.msra.mxu0 0.0
    %390 = vmatpush.msra.mxu0 0.0
    %391 = vmatpush.msra.mxu0 0.0
    %392 = vmatpush.msra.mxu0 0.0
    %393 = vmatpush.msra.mxu0 0.0
    %394 = vmatpush.msra.mxu0 0.0
    %395 = vmatpush.msra.mxu0 0.0
    %396 = vmatpush.msra.mxu0 0.0
    %397 = vmatpush.msra.mxu0 0.0
    %398 = vmatpush.msra.mxu0 0.0
    %399 = vmatpush.msra.mxu0 0.0
    %400 = vmatpush.msra.mxu0 %v376
    %401 = vmatpush.msra.mxu0 %v375
    %402 = vmatpush.msra.mxu0 %v374
    %403 = vmatpush.msra.mxu0 %v373
    %404 = vmatmul.f32.gmra.mxu0 %v386
    %v405 = vpop.f32.mrf.mxu0
    %v406 = vadd.f32 %v384, %v405
    %407 = vdwg.mxu0
    %408 = vst [vmem:[#allocation3] sm:$0x1] %v406
    // Predicated region
    $region38: #{tpu_custom_call.1} parent=1 // pred_check
      _
    $region39: #{tpu_custom_call.1} parent=1 // pred_check_branch
      %410 = sbr.rel (0) target = $region41
    $region40: #{tpu_custom_call.1} parent=1 // pred_region
      %412 = vsyncadd [#allocation4], 0
      %s414 = sshll.u32 [#allocation3], 4
      %s415 = int_to_ptr.vmem [resolvable:$true] %s414
      %s416 = sshll.u32 %s9, 4
      %s417 = int_to_ptr.hbm [resolvable:$true] %s416
      %419 = dma.vmem_to_hbm [thread:$0]  %s415, 16, %s417, [#allocation4]
    $region41: #{tpu_custom_call.1} parent=1 // pred_fallthru
      _
    // Predicated region
    $region42: #{tpu_custom_call.1} parent=1 // pred_check
      _
    $region43: #{tpu_custom_call.1} parent=1 // pred_check_branch
      %421 = sbr.rel (0) target = $region45
    $region44: #{tpu_custom_call.1} parent=1 // pred_region
      %423 = dma.done [#allocation4], 16
    $region45: #{tpu_custom_call.1} parent=1 // pred_fallthru
      _
    %424 = vsyncpa [#allocation4], 1

</llo_original>
